<compile_context>
chip_gen: v7x
topology: tpu7x:2x2x1
jax: 0.10.0
libtpu: 0.0.40
codegen_flags: <defaults>
</compile_context>

<pallas_src>
import functools

import jax
import jax.numpy as jnp
from jax.experimental import pallas as pl
from jax.experimental.pallas import tpu as pltpu

_LANES = 128
_MAX_TILE_ROWS = 4096            # 4096*128*4 B = 2 MiB per f32 input block
_CHUNK_ROWS = 512                # in-kernel accumulation chunk (bounds temporaries)
_VMEM_LIMIT_BYTES = 32 * 1024 * 1024  # safe on v5e/v6e (128 MiB) and v7x (64 MiB)


def _num_parallel_slices():
    """Leading 'parallel' grid-axis size: 2 TensorCores on v7x, else 1."""
    # TODO(synk): on v7x, pltpu.CORE_PARALLEL / pl.core_map may shard the axis
    # more reliably than the plain "parallel" hint; not verifiable here.
    try:
        kind = jax.devices()[0].device_kind.lower()
    except Exception:
        return 1
    return 2 if ("v7" in kind or "7x" in kind) else 1


def _sublane_granule(dtype):
    """Minimum second-to-last tile dim for a dtype (f32→8, bf16→16, int8/bool→32)."""
    return max(8, 32 // jnp.dtype(dtype).itemsize)


def _static_pow(x, gamma):
    """x ** gamma with trace-time specialization.

    Small integer gamma -> plain multiplies (VPU only); half-integer gamma
    (0.5, 1.5, 2.5, ...) -> multiplies + one sqrt (single EUP op) instead of
    the log+exp pair behind jnp.power.
    """
    g = float(gamma)
    if g == 0.0:
        return jnp.ones_like(x)
    if g == float(int(g)) and 1 <= int(g) <= 8:
        r = x
        for _ in range(int(g) - 1):
            r = r * x
        return r
    h = g - 0.5
    if h >= 0.0 and h == float(int(h)) and int(h) <= 8:
        r = jnp.sqrt(x)
        for _ in range(int(h)):
            r = r * x
        return r
    return jnp.power(x, jnp.float32(g))


def _focal_terms(pt, tgt, gamma, alpha):
    """Elementwise BCE focal loss, matching the PyTorch forward exactly."""
    eps = jnp.float32(1e-5)
    one = jnp.float32(1.0)
    a = jnp.float32(alpha)
    pos = tgt * jnp.log(pt + eps)
    neg = (one - tgt) * jnp.log(one - pt + eps)
    return -((one - a) * _static_pow(one - pt + eps, gamma) * pos
             + a * _static_pow(pt + eps, gamma) * neg)


def _accumulate_block(p_ref, t_ref, gamma, alpha, tile_rows, chunk_rows):
    """Fold a (tile_rows, 128) block into one (8, 128) partial sum.

    Processes the block in chunk_rows-row chunks so the f32 temporaries of the
    loss expression stay a few hundred KiB even at 2-4 MiB input tiles.
    """
    if tile_rows == chunk_rows:
        loss = _focal_terms(p_ref[...].astype(jnp.float32),
                            t_ref[...].astype(jnp.float32), gamma, alpha)
        return loss.reshape(tile_rows // 8, 8, _LANES).sum(axis=0)

    def body(j, acc):
        r0 = pl.multiple_of(j * chunk_rows, chunk_rows)
        loss = _focal_terms(p_ref[pl.ds(r0, chunk_rows), :].astype(jnp.float32),
                            t_ref[pl.ds(r0, chunk_rows), :].astype(jnp.float32),
                            gamma, alpha)
        return acc + loss.reshape(chunk_rows // 8, 8, _LANES).sum(axis=0)

    return jax.lax.fori_loop(0, tile_rows // chunk_rows, body,
                             jnp.zeros((8, _LANES), jnp.float32))


def _bce_focal_kernel(p_ref, t_ref, out_ref, *, gamma, alpha, tile_rows,
                      chunk_rows):
    i = pl.program_id(1)   # reduction step within this slice
    partial = _accumulate_block(p_ref, t_ref, gamma, alpha, tile_rows, chunk_rows)

    @pl.when(i == 0)
    def _():
        out_ref[...] = jnp.zeros_like(out_ref)

    out_ref[...] += partial[None, :, :]


def bce_focal_loss(predict, target, gamma=2, alpha=0.25, reduction='mean'):
    """Matches BCEFocalLoss(gamma, alpha, reduction).forward(predict, target)."""
    if reduction not in ('mean', 'sum'):
        # TODO(synk): reduction='none' (unreduced elementwise output) is not
        # wired into this fused-reduction kernel.
        raise NotImplementedError("reduction must be 'mean' or 'sum'")

    predict = jnp.asarray(predict)
    target = jnp.asarray(target)
    assert predict.shape == target.shape, "predict/target must share a shape"

    gamma = float(gamma)
    alpha = float(alpha)
    m_valid = int(predict.size)                      # static element count
    sub = max(_sublane_granule(predict.dtype), _sublane_granule(target.dtype))

    p_flat = predict.reshape(-1)                     # contiguous → free reshape
    t_flat = target.reshape(-1)

    rows_full = m_valid // _LANES                    # complete lane-dense rows
    ns = _num_parallel_slices()
    if ns > 1 and rows_full < ns * 2 * sub:          # too small to shard
        ns = 1

    # Rows each slice can cover with complete tiles (multiple of the granule).
    rows_avail = ((rows_full // ns) // sub) * sub

    total = jnp.float32(0.0)
    rows_kernel = 0
    if rows_avail > 0:
        tile_rows = min(_MAX_TILE_ROWS, rows_avail)
        if rows_avail >= 2 * sub and rows_avail // tile_rows < 2:
            # Ensure >=2 pipeline steps per slice so DMA overlaps compute.
            tile_rows = max(sub, ((rows_avail // 2) // sub) * sub)
        if tile_rows > _CHUNK_ROWS:
            tile_rows = (tile_rows // _CHUNK_ROWS) * _CHUNK_ROWS
        chunk_rows = min(tile_rows, _CHUNK_ROWS)
        tiles_per_slice = rows_avail // tile_rows
        rows_kernel = ns * tiles_per_slice * tile_rows

        if m_valid % _LANES == 0:
            # Pure reshape of a contiguous buffer: no copy.  The grid only
            # indexes the first rows_kernel rows; trailing rows go to the tail.
            p2 = p_flat.reshape(rows_full, _LANES)
            t2 = t_flat.reshape(rows_full, _LANES)
        else:
            # TODO(synk): this prefix slice materializes one copy of the
            # kernel-covered prefix; it only happens when predict.size is not a
            # multiple of 128 (a lane-dense 2-D view cannot alias otherwise).
            p2 = p_flat[: rows_kernel * _LANES].reshape(rows_kernel, _LANES)
            t2 = t_flat[: rows_kernel * _LANES].reshape(rows_kernel, _LANES)

        kernel = functools.partial(
            _bce_focal_kernel, gamma=gamma, alpha=alpha,
            tile_rows=tile_rows, chunk_rows=chunk_rows)

        in_map = lambda c, i: (c * tiles_per_slice + i, 0)   # noqa: E731

        partials = pl.pallas_call(
            kernel,
            out_shape=jax.ShapeDtypeStruct((ns, 8, _LANES), jnp.float32),
            grid_spec=pltpu.PrefetchScalarGridSpec(
                num_scalar_prefetch=0,
                grid=(ns, tiles_per_slice),
                in_specs=[
                    pl.BlockSpec((tile_rows, _LANES), in_map),   # predict tile
                    pl.BlockSpec((tile_rows, _LANES), in_map),   # target tile
                ],
                out_specs=pl.BlockSpec((1, 8, _LANES), lambda c, i: (c, 0, 0)),
            ),
            compiler_params=pltpu.CompilerParams(
                dimension_semantics=("parallel", "arbitrary"),
                vmem_limit_bytes=_VMEM_LIMIT_BYTES),
        )(p2, t2)
        total = jnp.sum(partials)                 # ns*8*128 floats — trivial

    # Ragged remainder (< one block of rows plus < one row of elements):
    # tiny elementwise + reduce done by XLA, no padding of the main array.
    tail_start = rows_kernel * _LANES
    if tail_start < m_valid:
        pt_tail = p_flat[tail_start:].astype(jnp.float32)
        tg_tail = t_flat[tail_start:].astype(jnp.float32)
        total = total + jnp.sum(_focal_terms(pt_tail, tg_tail, gamma, alpha))

    if reduction == 'mean':
        return total / jnp.float32(m_valid)
    return total


def _bce_focal_ref(predict, target, gamma, alpha, reduction):
    """Pure-JAX reference mirroring the PyTorch forward, for verification."""
    pt = predict.astype(jnp.float32)
    t = target.astype(jnp.float32)
    loss = -((1.0 - alpha) * (1.0 - pt + 1e-5) ** gamma * (t * jnp.log(pt + 1e-5))
             + alpha * (pt + 1e-5) ** gamma * ((1.0 - t) * jnp.log(1.0 - pt + 1e-5)))
    if reduction == 'mean':
        return jnp.mean(loss)
    if reduction == 'sum':
        return jnp.sum(loss)
    return loss


if __name__ == "__main__":
    key = jax.random.PRNGKey(0)
    k1, k2, k3, k4, k5, k6 = jax.random.split(key, 6)

    # Case 1: NCHW-style probabilities, default gamma/alpha, mean reduction.
    # Size is a multiple of 128 → zero-copy lane-dense view, kernel-only path.
    shape = (2, 4, 16, 16)
    predict = jax.random.uniform(k1, shape, dtype=jnp.float32,
                                 minval=0.01, maxval=0.99)
    target = jax.random.bernoulli(k2, 0.5, shape).astype(jnp.float32)

    out = bce_focal_loss(predict, target, gamma=2, alpha=0.25, reduction='mean')
    out = jax.block_until_ready(out)
    ref = _bce_focal_ref(predict, target, 2.0, 0.25, 'mean')
    assert jnp.allclose(out, ref, rtol=1e-5, atol=1e-6), (out, ref)

    # Case 2: ragged size (kernel covers the prefix, XLA handles the tail),
    # half-integer gamma (exercises sqrt-based power), sum reduction.
    shape2 = (5, 7, 61)
    predict2 = jax.random.uniform(k3, shape2, dtype=jnp.float32,
                                  minval=0.01, maxval=0.99)
    target2 = jax.random.bernoulli(k4, 0.5, shape2).astype(jnp.float32)

    out2 = bce_focal_loss(predict2, target2, gamma=1.5, alpha=0.4,
                          reduction='sum')
    out2 = jax.block_until_ready(out2)
    ref2 = _bce_focal_ref(predict2, target2, 1.5, 0.4, 'sum')
    assert jnp.allclose(out2, ref2, rtol=1e-5, atol=1e-5), (out2, ref2)

    # Case 3: tiny input (< one lane-dense row) — pure tail path, non-integer gamma.
    shape3 = (3, 5, 7)
    predict3 = jax.random.uniform(k5, shape3, dtype=jnp.float32,
                                  minval=0.01, maxval=0.99)
    target3 = jax.random.bernoulli(k6, 0.5, shape3).astype(jnp.float32)

    out3 = bce_focal_loss(predict3, target3, gamma=2.3, alpha=0.25,
                          reduction='mean')
    out3 = jax.block_until_ready(out3)
    ref3 = _bce_focal_ref(predict3, target3, 2.3, 0.25, 'mean')
    assert jnp.allclose(out3, ref3, rtol=1e-5, atol=1e-6), (out3, ref3)

    print("KERNEL_OK")
</pallas_src>

<mosaic_0001>
module attributes {stable_mosaic.version = 11 : i64} {
  func.func @_bce_focal_kernel(%arg0: i32, %arg1: i32, %arg2: memref<8x128xf32, #tpu.memory_space<vmem>>, %arg3: memref<8x128xf32, #tpu.memory_space<vmem>>, %arg4: memref<1x8x128xf32, #tpu.memory_space<vmem>>) attributes {dimension_semantics = [#tpu.dimension_semantics<parallel>, #tpu.dimension_semantics<arbitrary>], iteration_bounds = array<i64: 1, 2>, scalar_prefetch = 0 : i64, scratch_operands = 0 : i64, tpu.core_type = #tpu.core_type<tc>, window_params = [{transform_indices = @transform_0, window_bounds = array<i64: 8, 128>}, {transform_indices = @transform_1, window_bounds = array<i64: 8, 128>}, {transform_indices = @transform_2, window_bounds = array<i64: 1, 8, 128>}]} {
    %c0 = arith.constant 0 : index
    %c0_0 = arith.constant 0 : index
    %0 = vector.load %arg2[%c0, %c0_0] : memref<8x128xf32, #tpu.memory_space<vmem>>, vector<8x128xf32>
    %c0_1 = arith.constant 0 : index
    %c0_2 = arith.constant 0 : index
    %1 = vector.load %arg3[%c0_1, %c0_2] : memref<8x128xf32, #tpu.memory_space<vmem>>, vector<8x128xf32>
    %cst = arith.constant 9.99999974E-6 : f32
    %2 = vector.broadcast %cst : f32 to vector<8x128xf32>
    %3 = arith.addf %0, %2 : vector<8x128xf32>
    %4 = math.log %3 : vector<8x128xf32>
    %5 = arith.mulf %1, %4 : vector<8x128xf32>
    %cst_3 = arith.constant 1.000000e+00 : f32
    %6 = vector.broadcast %cst_3 : f32 to vector<8x128xf32>
    %7 = arith.subf %6, %1 : vector<8x128xf32>
    %cst_4 = arith.constant 1.000000e+00 : f32
    %8 = vector.broadcast %cst_4 : f32 to vector<8x128xf32>
    %9 = arith.subf %8, %0 : vector<8x128xf32>
    %cst_5 = arith.constant 9.99999974E-6 : f32
    %10 = vector.broadcast %cst_5 : f32 to vector<8x128xf32>
    %11 = arith.addf %9, %10 : vector<8x128xf32>
    %12 = math.log %11 : vector<8x128xf32>
    %13 = arith.mulf %7, %12 : vector<8x128xf32>
    %cst_6 = arith.constant 1.000000e+00 : f32
    %cst_7 = arith.constant 2.500000e-01 : f32
    %14 = arith.subf %cst_6, %cst_7 : f32
    %cst_8 = arith.constant 1.000000e+00 : f32
    %15 = vector.broadcast %cst_8 : f32 to vector<8x128xf32>
    %16 = arith.subf %15, %0 : vector<8x128xf32>
    %cst_9 = arith.constant 9.99999974E-6 : f32
    %17 = vector.broadcast %cst_9 : f32 to vector<8x128xf32>
    %18 = arith.addf %16, %17 : vector<8x128xf32>
    %19 = arith.mulf %18, %18 : vector<8x128xf32>
    %20 = vector.broadcast %14 : f32 to vector<8x128xf32>
    %21 = arith.mulf %20, %19 : vector<8x128xf32>
    %22 = arith.mulf %21, %5 : vector<8x128xf32>
    %cst_10 = arith.constant 9.99999974E-6 : f32
    %23 = vector.broadcast %cst_10 : f32 to vector<8x128xf32>
    %24 = arith.addf %0, %23 : vector<8x128xf32>
    %25 = arith.mulf %24, %24 : vector<8x128xf32>
    %cst_11 = arith.constant 2.500000e-01 : f32
    %26 = vector.broadcast %cst_11 : f32 to vector<8x128xf32>
    %27 = arith.mulf %26, %25 : vector<8x128xf32>
    %28 = arith.mulf %27, %13 : vector<8x128xf32>
    %29 = arith.addf %22, %28 : vector<8x128xf32>
    %cst_12 = arith.constant 0.000000e+00 : f32
    %30 = vector.broadcast %cst_12 : f32 to vector<8x128xf32>
    %31 = arith.subf %30, %29 : vector<8x128xf32>
    %32 = vector.shape_cast %31 : vector<8x128xf32> to vector<1x8x128xf32>
    %cst_13 = arith.constant dense<0.000000e+00> : vector<8x128xf32>
    %33 = vector.multi_reduction <add>, %32, %cst_13 [0] : vector<1x8x128xf32> to vector<8x128xf32>
    %c0_i32 = arith.constant 0 : i32
    %34 = arith.cmpi eq, %arg1, %c0_i32 : i32
    %35 = arith.extui %34 : i1 to i32
    %c0_i32_14 = arith.constant 0 : i32
    %36 = arith.cmpi ne, %35, %c0_i32_14 : i32
    scf.if %36 {
      %cst_21 = arith.constant 0.000000e+00 : f32
      %41 = vector.broadcast %cst_21 : f32 to vector<1x8x128xf32>
      %c0_22 = arith.constant 0 : index
      %c0_23 = arith.constant 0 : index
      %c0_24 = arith.constant 0 : index
      %42 = vector.load %arg4[%c0_22, %c0_23, %c0_24] : memref<1x8x128xf32, #tpu.memory_space<vmem>>, vector<1x8x128xf32>
      tpu.vector_store %arg4[%c0_22, %c0_23, %c0_24], %41 {strides = array<i32>} : memref<1x8x128xf32, #tpu.memory_space<vmem>>, vector<1x8x128xf32>,
    } else {
    }
    %c0_15 = arith.constant 0 : index
    %c0_16 = arith.constant 0 : index
    %c0_17 = arith.constant 0 : index
    %37 = vector.load %arg4[%c0_15, %c0_16, %c0_17] : memref<1x8x128xf32, #tpu.memory_space<vmem>>, vector<1x8x128xf32>
    %38 = vector.shape_cast %33 : vector<8x128xf32> to vector<1x8x128xf32>
    %39 = arith.addf %37, %38 : vector<1x8x128xf32>
    %c0_18 = arith.constant 0 : index
    %c0_19 = arith.constant 0 : index
    %c0_20 = arith.constant 0 : index
    %40 = vector.load %arg4[%c0_18, %c0_19, %c0_20] : memref<1x8x128xf32, #tpu.memory_space<vmem>>, vector<1x8x128xf32>
    tpu.vector_store %arg4[%c0_18, %c0_19, %c0_20], %39 {strides = array<i32>} : memref<1x8x128xf32, #tpu.memory_space<vmem>>, vector<1x8x128xf32>,
    return
  }
  func.func @transform_0(%arg0: i32, %arg1: i32) -> (i32, i32) {
    %c2_i32 = arith.constant 2 : i32
    %0 = arith.muli %arg0, %c2_i32 : i32
    %1 = arith.addi %0, %arg1 : i32
    %c0_i32 = arith.constant 0 : i32
    %c0_i32_0 = arith.constant 0 : i32
    return %1, %c0_i32 : i32, i32
  }
  func.func @transform_1(%arg0: i32, %arg1: i32) -> (i32, i32) {
    %c2_i32 = arith.constant 2 : i32
    %0 = arith.muli %arg0, %c2_i32 : i32
    %1 = arith.addi %0, %arg1 : i32
    %c0_i32 = arith.constant 0 : i32
    %c0_i32_0 = arith.constant 0 : i32
    return %1, %c0_i32 : i32, i32
  }
  func.func @transform_2(%arg0: i32, %arg1: i32) -> (i32, i32, i32) {
    %c0_i32 = arith.constant 0 : i32
    %c0_i32_0 = arith.constant 0 : i32
    %c0_i32_1 = arith.constant 0 : i32
    return %arg0, %c0_i32, %c0_i32_0 : i32, i32, i32
  }
}

</mosaic_0001>

<llo_original>
// kernel: tpu_custom_call.1
$region0: #{tpu_custom_call.1}
  #allocation0 [shape = 'u32[]', space=smem, size = 0x4, offset = 0x4, fixed_abs, tag = 'smem constant byte address 0x4 - core index']
  #allocation1 [shape = 'u32[144,128]{1,0:T(1,128)}', space=vmem, size = 0x12000, scoped, tag = 'internal scratch']
  %s0 = inlined_call_operand.hbm [shape: f32[16,128], index: 0, kind: input, shape index: {}]
  %s1 = inlined_call_operand.hbm [shape: f32[16,128], index: 1, kind: input, shape index: {}]
  %s2 = inlined_call_operand.hbm [shape: f32[1,8,128], index: 2, kind: output, shape index: {}]
  %s3 = sld [smem:[#allocation0]]
  $region53: #{tpu_custom_call.1} parent=0
    _
  %s5 = ssub.s32 1, %s3
  %s6 = scalar_select 0, %s5, %s3
  $region1: #{tpu_custom_call.1} parent=0
    #allocation2 [shape = 'u8[8192]{0}', space=vmem, size = 0x2000, scoped, tag = 'input window, operand 0']
    #allocation3 [shape = 's32[2]{0}', space=sflag, size = 0x8, scoped, tag = 'scoped memory for tpu_custom_call.1']
    #allocation4 [shape = 's32[2]{0}', space=sflag, size = 0x8, scoped, tag = 'scoped memory for tpu_custom_call.1']
    #allocation5 [shape = 'u8[8192]{0}', space=vmem, size = 0x2000, scoped, tag = 'input window, operand 1']
    #allocation6 [shape = 's32[2]{0}', space=sflag, size = 0x8, scoped, tag = 'scoped memory for tpu_custom_call.1']
    #allocation7 [shape = 'u8[4096]{0}', space=vmem, size = 0x1000, scoped, tag = 'output window, operand 0, single buffered']
    %7 = vsyncpa [#allocation3], 0
    %s8 = scalar_lea.sflag [#allocation3], 1
    %9 = vsyncpa %s8, 0
    %10 = vsyncpa [#allocation6], 0
    %s11 = scalar_lea.sflag [#allocation6], 1
    %12 = vsyncpa %s11, 0
    %13 = vsyncpa [#allocation4], 0
    loop: start=0, step=1, limit=4
    $region2: #{tpu_custom_call.1} parent=1 // loop_pre_header
      _
    $region3: #{tpu_custom_call.1} parent=1 // loop_header
      %s15 = sphi 0, %s19
      %p16 = scmp.ge.s32.totalorder %s15, 4
      %s22 = sphi 0, %s34
      %s23 = sphi 0, %s30
      %s24 = sphi 0, %s22
      %s25 = sphi 0, %s23
      %s26 = sphi 0, %s24
      %s27 = sphi 0, %s25
      %s41 = sphi 0, %s43
      %s44 = sphi 0, %s41
      %s45 = sphi 0, %s44
      %s61 = sphi 0, %s45
      %s71 = sphi 0, %s73
      %s74 = sphi 0, %s71
      %s75 = sphi 0, %s74
      %s91 = sphi 0, %s75
      %s97 = sphi 0, %s99
      %s100 = sphi 0, %s97
      %s101 = sphi 0, %s100
      %s117 = sphi 0, %s101
    $region4: #{tpu_custom_call.1} parent=1 // loop_header_branch
      %18 = sbr.rel (%p16) target = $region8
    $region5: #{tpu_custom_call.1} parent=1 // loop_body
      %s20 = ssub.s32 %s15, 1
      %s21 = ssub.s32 %s15, 2
      %s28 = sadd.s32 1, %s23
      %p29 = scmp.ge.s32.totalorder %s28, 2
      %s30 = scalar_select %p29, 0, %s28
      %s31 = sadd.s32 1, %s22
      %s32 = scalar_select %p29, %s31, %s22
      %p33 = scmp.ge.s32.totalorder %s32, 1
      %s34 = scalar_select %p33, 0, %s32
      %s35 = smul.u32 %s22, 2
      %s36 = sadd.s32 %s35, %s23
      %s37 = smul.u32 %s34, 2
      %s38 = sadd.s32 %s37, %s30
      %s39 = ssub.s32 %s36, %s38
      %p40 = scmp.eq.s32.totalorder %s39, 0
      %s42 = sadd.s32 %s41, 1
      %s43 = scalar_select %p40, %s41, %s42
      %p46 = pneg %p40
      %p47 = scmp.eq.s32.totalorder %s15, 1
      %p48 = por %p46, %p47
      %p49 = scmp.ne.s32.totalorder %s41, %s44
      %p50 = scmp.eq.s32.totalorder %s15, 0
      %p51 = por %p49, %p50
      %p52 = scmp.ne.s32.totalorder %s41, %s44
      %p53 = scmp.eq.s32.totalorder %s20, 1
      %p54 = por %p52, %p53
      %p55 = scmp.ne.s32.totalorder %s44, %s45
      %p56 = scmp.eq.s32.totalorder %s20, 0
      %p57 = por %p55, %p56
      %p58 = scmp.ne.s32.totalorder %s44, %s45
      %p59 = scmp.eq.s32.totalorder %s21, 1
      %p60 = por %p58, %p59
      %p62 = scmp.ne.s32.totalorder %s45, %s61
      %p63 = scmp.eq.s32.totalorder %s21, 0
      %p64 = por %p62, %p63
      %s65 = smul.u32 %s22, 2
      %s66 = sadd.s32 %s65, %s23
      %s67 = smul.u32 %s34, 2
      %s68 = sadd.s32 %s67, %s30
      %s69 = ssub.s32 %s66, %s68
      %p70 = scmp.eq.s32.totalorder %s69, 0
      %s72 = sadd.s32 %s71, 1
      %s73 = scalar_select %p70, %s71, %s72
      %p76 = pneg %p70
      %p77 = scmp.eq.s32.totalorder %s15, 1
      %p78 = por %p76, %p77
      %p79 = scmp.ne.s32.totalorder %s71, %s74
      %p80 = scmp.eq.s32.totalorder %s15, 0
      %p81 = por %p79, %p80
      %p82 = scmp.ne.s32.totalorder %s71, %s74
      %p83 = scmp.eq.s32.totalorder %s20, 1
      %p84 = por %p82, %p83
      %p85 = scmp.ne.s32.totalorder %s74, %s75
      %p86 = scmp.eq.s32.totalorder %s20, 0
      %p87 = por %p85, %p86
      %p88 = scmp.ne.s32.totalorder %s74, %s75
      %p89 = scmp.eq.s32.totalorder %s21, 1
      %p90 = por %p88, %p89
      %p92 = scmp.ne.s32.totalorder %s75, %s91
      %p93 = scmp.eq.s32.totalorder %s21, 0
      %p94 = por %p92, %p93
      %s95 = ssub.s32 %s22, %s34
      %p96 = scmp.eq.s32.totalorder %s95, 0
      %s98 = sadd.s32 %s97, 1
      %s99 = scalar_select %p96, %s97, %s98
      %p102 = pneg %p96
      %p103 = scmp.eq.s32.totalorder %s15, 1
      %p104 = por %p102, %p103
      %p105 = scmp.ne.s32.totalorder %s97, %s100
      %p106 = scmp.eq.s32.totalorder %s15, 0
      %p107 = por %p105, %p106
      %p108 = scmp.ne.s32.totalorder %s97, %s100
      %p109 = scmp.eq.s32.totalorder %s20, 1
      %p110 = por %p108, %p109
      %p111 = scmp.ne.s32.totalorder %s100, %s101
      %p112 = scmp.eq.s32.totalorder %s20, 0
      %p113 = por %p111, %p112
      %p114 = scmp.ne.s32.totalorder %s100, %s101
      %p115 = scmp.eq.s32.totalorder %s21, 1
      %p116 = por %p114, %p115
      %p118 = scmp.ne.s32.totalorder %s101, %s117
      %p119 = scmp.eq.s32.totalorder %s21, 0
      %p120 = por %p118, %p119
      %p121 = scmp.le.s32.totalorder 1, %s15
      %p122 = scmp.lt.s32.totalorder %s15, 3
      %p123 = pnand %p121, %p122
      %p124 = pneg %p123
      // Predicated region
      $region9: #{tpu_custom_call.1} parent=5 // pred_check
        _
      $region10: #{tpu_custom_call.1} parent=5 // pred_check_branch
        %126 = sbr.rel (%p123) target = $region12
      $region11: #{tpu_custom_call.1} parent=5 // pred_region
        %s127 = ssub.s32 %s15, 1
      $region12: #{tpu_custom_call.1} parent=5 // pred_fallthru
        _
      %p128 = scmp.lt.s32.totalorder %s15, 2
      // Predicated region
      $region13: #{tpu_custom_call.1} parent=5 // pred_check
        %p129 = pneg %p128
      $region14: #{tpu_custom_call.1} parent=5 // pred_check_branch
        %131 = sbr.rel (%p129) target = $region16
      $region15: #{tpu_custom_call.1} parent=5 // pred_region
        // Predicated region
        $region17: #{tpu_custom_call.1} parent=15 // pred_check
          %p132 = pneg %p51
        $region18: #{tpu_custom_call.1} parent=15 // pred_check_branch
          %134 = sbr.rel (%p132) target = $region20
        $region19: #{tpu_custom_call.1} parent=15 // pred_region
          %s135 = sand.u32 %s41, 1
          %s136 = scalar_lea.sflag [#allocation3], %s135
          %s137 = sand.u32 %s41, 1
          %s138 = smul.addr %s137, 8
          %s139 = scalar_lea.vmem [#allocation2], %s138
          %s140 = smul.u32 %s22, 2
          %s141 = sadd.s32 %s140, %s23
          %s143 = ssub.s32 128, 128
          %144 = vsyncadd %s136, %s143
          %s145 = smul.addr %s141, 128
          %s146 = scalar_lea.hbm %s0, %s145
          %s148 = sshll.u32 %s139, 4
          %s149 = int_to_ptr.vmem [resolvable:$true] %s148
          %151 = dma.hbm_to_vmem [thread:$0]  %s146, 128, %s149, %s136
        $region20: #{tpu_custom_call.1} parent=15 // pred_fallthru
          _
        // Predicated region
        $region21: #{tpu_custom_call.1} parent=15 // pred_check
          %p152 = pneg %p81
        $region22: #{tpu_custom_call.1} parent=15 // pred_check_branch
          %154 = sbr.rel (%p152) target = $region24
        $region23: #{tpu_custom_call.1} parent=15 // pred_region
          %s155 = sand.u32 %s71, 1
          %s156 = scalar_lea.sflag [#allocation6], %s155
          %s157 = sand.u32 %s71, 1
          %s158 = smul.addr %s157, 8
          %s159 = scalar_lea.vmem [#allocation5], %s158
          %s160 = smul.u32 %s22, 2
          %s161 = sadd.s32 %s160, %s23
          %s163 = ssub.s32 128, 128
          %164 = vsyncadd %s156, %s163
          %s165 = smul.addr %s161, 128
          %s166 = scalar_lea.hbm %s1, %s165
          %s168 = sshll.u32 %s159, 4
          %s169 = int_to_ptr.vmem [resolvable:$true] %s168
          %171 = dma.hbm_to_vmem [thread:$0]  %s166, 128, %s169, %s156
        $region24: #{tpu_custom_call.1} parent=15 // pred_fallthru
          _
      $region16: #{tpu_custom_call.1} parent=5 // pred_fallthru
        _
      %p172 = scmp.le.s32.totalorder 1, %s15
      %p173 = scmp.lt.s32.totalorder %s15, 3
      %p174 = pnand %p172, %p173
      %p175 = pneg %p174
      // Predicated region
      $region25: #{tpu_custom_call.1} parent=5 // pred_check
        _
      $region26: #{tpu_custom_call.1} parent=5 // pred_check_branch
        %177 = sbr.rel (%p174) target = $region28
      $region27: #{tpu_custom_call.1} parent=5 // pred_region
        %s178 = ssub.s32 %s15, 1
        %s179 = sand.u32 %s44, 1
        %s180 = scalar_lea.sflag [#allocation3], %s179
        %s181 = sand.u32 %s44, 1
        %s182 = smul.addr %s181, 8
        %s183 = scalar_lea.vmem [#allocation2], %s182
        // Predicated region
        $region29: #{tpu_custom_call.1} parent=27 // pred_check
          %p184 = pneg %p57
        $region30: #{tpu_custom_call.1} parent=27 // pred_check_branch
          %186 = sbr.rel (%p184) target = $region32
        $region31: #{tpu_custom_call.1} parent=27 // pred_region
          %187 = dma.done %s180, 128
        $region32: #{tpu_custom_call.1} parent=27 // pred_fallthru
          _
        %s188 = sand.u32 %s74, 1
        %s189 = scalar_lea.sflag [#allocation6], %s188
        %s190 = sand.u32 %s74, 1
        %s191 = smul.addr %s190, 8
        %s192 = scalar_lea.vmem [#allocation5], %s191
        // Predicated region
        $region33: #{tpu_custom_call.1} parent=27 // pred_check
          %p193 = pneg %p87
        $region34: #{tpu_custom_call.1} parent=27 // pred_check_branch
          %195 = sbr.rel (%p193) target = $region36
        $region35: #{tpu_custom_call.1} parent=27 // pred_region
          %196 = dma.done %s189, 128
        $region36: #{tpu_custom_call.1} parent=27 // pred_fallthru
          _
        %s197 = sand.u32 %s44, 1
        %s198 = scalar_lea.sflag [#allocation3], %s197
        %s199 = sand.u32 %s44, 1
        %s200 = smul.addr %s199, 8
        %s201 = scalar_lea.vmem [#allocation2], %s200
        %p202 = pneg %p57
        %p203 = pneg %p54
        %s204 = sand.u32 %s74, 1
        %s205 = scalar_lea.sflag [#allocation6], %s204
        %s206 = sand.u32 %s74, 1
        %s207 = smul.addr %s206, 8
        %s208 = scalar_lea.vmem [#allocation5], %s207
        %p209 = pneg %p87
        %p210 = pneg %p84
        %p211 = pneg %p113
        %p212 = pneg %p110
        %s213 = smul.u32 %s24, 2
        %s214 = sadd.s32 %s213, %s25
        %s215 = smul.u32 %s24, 2
        %s216 = sadd.s32 %s215, %s25
        %v217 = vld [vmem:[%s183] sm:$0xff]
        %v218 = vld [vmem:[%s192] sm:$0xff]
        %v219 = vadd.f32 %v217, 1e-05
        %v220 = vlog2.pop %v219
        %v221 = vmul.f32 %v220, 0.6931472
        %v222 = vmul.f32 %v218, %v221
        %v223 = vsub.f32 1.0, %v218
        %v224 = vsub.f32 1.0, %v217
        %v225 = vadd.f32 %v224, 1e-05
        %v226 = vlog2.pop %v225
        %v227 = vmul.f32 %v226, 0.6931472
        %v228 = vmul.f32 %v223, %v227
        %v229 = vmul.f32 %v225, %v225
        %v230 = vmul.f32 %v229, 0.75
        %v231 = vmul.f32 %v230, %v222
        %v232 = vmul.f32 %v219, %v219
        %v233 = vmul.f32 %v232, 0.25
        %v234 = vmul.f32 %v233, %v228
        %v235 = vadd.f32 %v231, %v234
        %v236 = vsub.f32 0.0, %v235
        %v237 = vadd.f32 %v236, 0.0
        %p238 = scmp.eq.s32.totalorder %s25, 0
        // Predicated region
        $region37: #{tpu_custom_call.1} parent=27 // pred_check
          %p239 = pneg %p238
        $region38: #{tpu_custom_call.1} parent=27 // pred_check_branch
          %241 = sbr.rel (%p239) target = $region40
        $region39: #{tpu_custom_call.1} parent=27 // pred_region
          %242 = vst [vmem:[#allocation7] sm:$0xff] 0.0
        $region40: #{tpu_custom_call.1} parent=27 // pred_fallthru
          _
        %v243 = vld [vmem:[#allocation7] sm:$0xff]
        %v244 = vadd.f32 %v243, %v237
        %245 = vst [vmem:[#allocation7] sm:$0xff] %v244
        // Predicated region
        $region41: #{tpu_custom_call.1} parent=27 // pred_check
          %p246 = pneg %p110
        $region42: #{tpu_custom_call.1} parent=27 // pred_check_branch
          %248 = sbr.rel (%p246) target = $region44
        $region43: #{tpu_custom_call.1} parent=27 // pred_region
          %s250 = ssub.s32 128, 128
          %251 = vsyncadd [#allocation4], %s250
          %s252 = smul.addr %s24, 128
          %s253 = scalar_lea.hbm %s2, %s252
          %s255 = sshll.u32 [#allocation7], 4
          %s256 = int_to_ptr.vmem [resolvable:$true] %s255
          %258 = dma.vmem_to_hbm [thread:$0]  %s256, 128, %s253, [#allocation4]
        $region44: #{tpu_custom_call.1} parent=27 // pred_fallthru
          _
        // Predicated region
        $region45: #{tpu_custom_call.1} parent=27 // pred_check
          %p259 = pneg %p110
        $region46: #{tpu_custom_call.1} parent=27 // pred_check_branch
          %261 = sbr.rel (%p259) target = $region48
        $region47: #{tpu_custom_call.1} parent=27 // pred_region
          %262 = dma.done [#allocation4], 128
        $region48: #{tpu_custom_call.1} parent=27 // pred_fallthru
          _
      $region28: #{tpu_custom_call.1} parent=5 // pred_fallthru
        _
      %p263 = scmp.le.s32.totalorder 2, %s15
      // Predicated region
      $region49: #{tpu_custom_call.1} parent=5 // pred_check
        %p264 = pneg %p263
      $region50: #{tpu_custom_call.1} parent=5 // pred_check_branch
        %266 = sbr.rel (%p264) target = $region52
      $region51: #{tpu_custom_call.1} parent=5 // pred_region
        %s267 = ssub.s32 %s15, 2
      $region52: #{tpu_custom_call.1} parent=5 // pred_fallthru
        _
    $region6: #{tpu_custom_call.1} parent=1 // loop_footer
      %s19 = sadd.s32 1, %s15
    $region7: #{tpu_custom_call.1} parent=1 // loop_footer_branch
      %14 = sbr.rel target = $region3
    $region8: #{tpu_custom_call.1} parent=1 // loop_exit
      _
    %268 = vsyncpa [#allocation3], 1
    %s269 = scalar_lea.sflag [#allocation3], 1
    %270 = vsyncpa %s269, 1
    %271 = vsyncpa [#allocation6], 1
    %s272 = scalar_lea.sflag [#allocation6], 1
    %273 = vsyncpa %s272, 1
    %274 = vsyncpa [#allocation4], 1
    %s275 = scalar_lea.sflag [#allocation4], 1
    %276 = vsyncpa %s275, 1

</llo_original>
